<compile_context>
chip_gen: v7x
topology: tpu7x:2x2x1
jax: 0.10.0
libtpu: 0.0.40
codegen_flags: <defaults>
</compile_context>

<pallas_src>
import functools

import jax
import jax.numpy as jnp
from jax.experimental import pallas as pl
from jax.experimental.pallas import tpu as pltpu


def _round_up(x, m):
    return ((x + m - 1) // m) * m


def _vmem_bytes_needed(ts, kp, cp):
    """Conservative per-kernel VMEM residency estimate for spatial tile `ts`."""
    patches_db = 2 * kp * ts * 2        # bf16 patch tile, double-buffered
    feat = cp * ts * 4                  # f32 matmul result (per step intermediate)
    weights = 2 * cp * kp * 2           # resident (CP, KP) bf16 weights (x2 buffers)
    acc = cp * 128 * 4                  # f32 GAP accumulator scratch
    out_db = 2 * cp * 128 * 4           # f32 output block, double-buffered
    return patches_db + feat + weights + acc + out_db


def _pick_spatial_tile(hw_pad, kp, cp, vmem_budget):
    """Largest multiple-of-128 divisor of hw_pad whose residency fits the budget."""
    best = 128
    t = 128
    while t <= hw_pad:
        if hw_pad % t == 0 and _vmem_bytes_needed(t, kp, cp) <= vmem_budget:
            best = t
        t += 128
    return best


def conv_gap_kernel(p_ref, wct_ref, o_ref, acc_ref, *, lanes_per_step):
    """One grid step (batch b, spatial tile s).

    p_ref  : (1, KP, TS)  bf16  im2col patches (K on sublanes, spatial on lanes);
                                row K holds 1.0 for valid positions (bias lane).
    wct_ref: (CP, KP)     bf16  conv weights transposed; column K holds the bias.
    o_ref  : (1, CP, 128) f32   per-batch lane-partial channel sums (written once).
    acc_ref: (CP, 128)    f32   VMEM scratch accumulator.
    """
    s = pl.program_id(1)

    @pl.when(s == 0)
    def _init():
        acc_ref[...] = jnp.zeros_like(acc_ref)

    # Single MXU contraction per tile: (CP, KP) @ (KP, TS) -> (CP, TS), f32 acc.
    # Bias is already folded into the KP dimension, so only the ReLU remains.
    feat = jnp.dot(wct_ref[...], p_ref[0], preferred_element_type=jnp.float32)
    feat = jnp.maximum(feat, 0.0)

    # Partial AdaptiveAvgPool2d((1,1)): lane-aligned 128-wide chunk adds (VPU only,
    # no per-step cross-lane reduction). Padded spatial columns are all-zero.
    partial = feat[:, 0:128]
    for i in range(1, lanes_per_step):
        partial = partial + feat[:, i * 128:(i + 1) * 128]
    acc_ref[...] += partial

    @pl.when(s == pl.num_programs(1) - 1)
    def _finalize():
        o_ref[0] = acc_ref[...]


def encoder_cnn_forward(images_nchw, params, *, spatial_tile=None):
    """images_nchw: (B, 3, H, W) float32 -> (B, embed_size) float32."""
    w_conv, b_conv, w_embed, b_embed = params
    B, Cin, H, W = images_nchw.shape
    KH, KW, _, Cout = w_conv.shape
    E = w_embed.shape[1]
    HW = H * W
    assert KH % 2 == 1 and KW % 2 == 1, "SAME padding assumes odd kernel"

    # ---- wrapper-side im2col directly from NCHW: (B, K, HW), K on sublanes ------
    ph, pw = (KH - 1) // 2, (KW - 1) // 2
    x_pad = jnp.pad(images_nchw.astype(jnp.float32),
                    ((0, 0), (0, 0), (ph, ph), (pw, pw)))
    taps = [x_pad[:, :, kh:kh + H, kw:kw + W].reshape(B, Cin, HW)
            for kh in range(KH) for kw in range(KW)]
    K = KH * KW * Cin
    patches = jnp.concatenate(taps, axis=1)                     # (B, K, HW)

    # Bias lane: 1.0 for every valid spatial position (zero in spatial padding).
    ones_row = jnp.ones((B, 1, HW), jnp.float32)
    patches = jnp.concatenate([patches, ones_row], axis=1)      # (B, K+1, HW)

    # ---- layout padding: K -> multiple of 32 (bf16 sublanes), HW -> mult of 128 --
    KP = _round_up(K + 1, 32)
    CP = _round_up(Cout, 128)
    HWP = _round_up(HW, 128)
    patches = jnp.pad(patches, ((0, 0), (0, KP - (K + 1)),
                                (0, HWP - HW))).astype(jnp.bfloat16)

    # (CP, KP) weight matrix with the bias folded into column K.
    wct = jnp.zeros((CP, KP), jnp.float32)
    wct = wct.at[:Cout, :K].set(w_conv.reshape(K, Cout).T)
    wct = wct.at[:Cout, K].set(b_conv[0])
    wct = wct.astype(jnp.bfloat16)

    # ---- per-generation VMEM budget & tile size ---------------------------------
    try:
        info = pltpu.get_tpu_info()
        vmem_cap = int(getattr(info, "vmem_capacity_bytes", 64 * 1024 * 1024))
    except Exception:
        vmem_cap = 64 * 1024 * 1024                             # v7x-safe default
    budget = int(0.6 * vmem_cap)                                # leave headroom
    ts = spatial_tile if spatial_tile is not None else _pick_spatial_tile(
        HWP, KP, CP, budget)
    assert ts % 128 == 0 and HWP % ts == 0, (HWP, ts)
    lanes_per_step = ts // 128

    need = _vmem_bytes_needed(ts, KP, CP)
    vmem_limit = int(min(0.75 * vmem_cap, max(32 * 1024 * 1024, 2 * need)))

    grid = (B, HWP // ts)

    # ---- fused conv + ReLU + partial-GAP kernel ----------------------------------
    sums_lanes = pl.pallas_call(
        functools.partial(conv_gap_kernel, lanes_per_step=lanes_per_step),
        out_shape=jax.ShapeDtypeStruct((B, CP, 128), jnp.float32),
        grid=grid,
        in_specs=[
            pl.BlockSpec((1, KP, ts), lambda b, s: (b, 0, s)),   # patch tile
            pl.BlockSpec((CP, KP), lambda b, s: (0, 0)),         # conv weights+bias
        ],
        out_specs=pl.BlockSpec((1, CP, 128), lambda b, s: (b, 0, 0)),
        scratch_shapes=[pltpu.VMEM((CP, 128), jnp.float32)],
        compiler_params=pltpu.CompilerParams(
            dimension_semantics=("parallel", "arbitrary"),
            vmem_limit_bytes=vmem_limit),
    )(patches, wct)

    # ---- finish GAP + trainable embed Linear in XLA (tiny, batch-wide matmul) ----
    pooled = sums_lanes.sum(axis=-1)[:, :Cout] * (1.0 / HW)      # (B, Cout) f32
    return pooled @ w_embed + b_embed[0]                         # (B, E)


def encoder_cnn_reference(images_nchw, params):
    """Pure-JAX reference (f32) with the same semantics."""
    w_conv, b_conv, w_embed, b_embed = params
    x = jnp.transpose(images_nchw, (0, 2, 3, 1))
    feat = jax.lax.conv_general_dilated(
        x, w_conv, window_strides=(1, 1), padding="SAME",
        dimension_numbers=("NHWC", "HWIO", "NHWC"))
    feat = jnp.maximum(feat + b_conv[0], 0.0)
    pooled = feat.mean(axis=(1, 2))                              # AdaptiveAvgPool2d((1,1))
    return pooled @ w_embed + b_embed[0]                         # Linear embed


def init_params(key, in_channels=3, feat_channels=128, embed_size=32):
    k_conv, k_bias, k_embed = jax.random.split(key, 3)
    # Frozen backbone stand-in (deterministic, not trained), HWIO layout.
    w_conv = jax.random.normal(
        k_conv, (3, 3, in_channels, feat_channels), jnp.float32) * 0.1
    b_conv = jax.random.normal(k_bias, (1, feat_channels), jnp.float32) * 0.05
    # self.embed = nn.Linear(feat_channels, embed_size)
    #   I.xavier_uniform_(weight); I.constant_(bias, 0)
    bound = (6.0 / (feat_channels + embed_size)) ** 0.5
    w_embed_pt = jax.random.uniform(
        k_embed, (embed_size, feat_channels), jnp.float32, -bound, bound)
    w_embed = w_embed_pt.T                                       # (feat_channels, embed)
    b_embed = jnp.zeros((1, embed_size), jnp.float32)
    return w_conv, b_conv, w_embed, b_embed


if __name__ == "__main__":
    key = jax.random.PRNGKey(0)
    k_img, k_params = jax.random.split(key)

    B, C, H, W = 2, 3, 32, 32
    embed_size = 32
    feat_channels = 128          # lane-dense channel count (real ResNet50: 2048)
    images = jax.random.normal(k_img, (B, C, H, W), jnp.float32)   # NCHW like PyTorch
    params = init_params(k_params, in_channels=C, feat_channels=feat_channels,
                         embed_size=embed_size)

    # spatial_tile=256 -> grid (B, 4) with 2 lane-chunks per step: exercises both the
    # pipelined accumulation path and the in-kernel chunked partial sums.
    fwd = jax.jit(functools.partial(encoder_cnn_forward, spatial_tile=256))
    out = jax.block_until_ready(fwd(images, params))
    assert out.shape == (B, embed_size), out.shape
    assert out.dtype == jnp.float32

    ref = encoder_cnn_reference(images, params)
    max_err = float(jnp.max(jnp.abs(out - ref)))
    # bf16 operands for the frozen conv stage (intentional precision choice);
    # epilogue / pooling / embed stay f32.
    assert jnp.allclose(out, ref, atol=1e-2, rtol=5e-2), max_err
    print("KERNEL_OK")
</pallas_src>

<mosaic_0001>
module attributes {stable_mosaic.version = 11 : i64} {
  func.func @conv_gap_kernel(%arg0: i32, %arg1: i32, %arg2: memref<1x32x256xbf16, #tpu.memory_space<vmem>>, %arg3: memref<128x32xbf16, #tpu.memory_space<vmem>>, %arg4: memref<1x128x128xf32, #tpu.memory_space<vmem>>, %arg5: memref<128x128xf32, #tpu.memory_space<vmem>>) attributes {dimension_semantics = [#tpu.dimension_semantics<parallel>, #tpu.dimension_semantics<arbitrary>], iteration_bounds = array<i64: 2, 4>, scalar_prefetch = 0 : i64, scratch_operands = 1 : i64, tpu.core_type = #tpu.core_type<tc>, window_params = [{transform_indices = @transform_0, window_bounds = array<i64: 1, 32, 256>}, {pipeline_mode = #tpu.pipeline_mode<synchronous>, transform_indices = @transform_1, window_bounds = array<i64: 128, 32>}, {transform_indices = @transform_2, window_bounds = array<i64: 1, 128, 128>}]} {
    %c0_i32 = arith.constant 0 : i32
    %0 = arith.cmpi eq, %arg1, %c0_i32 : i32
    %1 = arith.extui %0 : i1 to i32
    %c0_i32_0 = arith.constant 0 : i32
    %2 = arith.cmpi ne, %1, %c0_i32_0 : i32
    scf.if %2 {
      %cst_11 = arith.constant 0.000000e+00 : f32
      %18 = vector.broadcast %cst_11 : f32 to vector<128x128xf32>
      %c0_12 = arith.constant 0 : index
      %c0_13 = arith.constant 0 : index
      %19 = vector.load %arg5[%c0_12, %c0_13] : memref<128x128xf32, #tpu.memory_space<vmem>>, vector<128x128xf32>
      tpu.vector_store %arg5[%c0_12, %c0_13], %18 {strides = array<i32>} : memref<128x128xf32, #tpu.memory_space<vmem>>, vector<128x128xf32>,
    } else {
    }
    %c0 = arith.constant 0 : index
    %c0_1 = arith.constant 0 : index
    %3 = vector.load %arg3[%c0, %c0_1] : memref<128x32xbf16, #tpu.memory_space<vmem>>, vector<128x32xbf16>
    %c0_2 = arith.constant 0 : index
    %c0_3 = arith.constant 0 : index
    %c0_4 = arith.constant 0 : index
    %4 = vector.load %arg2[%c0_2, %c0_3, %c0_4] : memref<1x32x256xbf16, #tpu.memory_space<vmem>>, vector<1x32x256xbf16>
    %5 = vector.shape_cast %4 : vector<1x32x256xbf16> to vector<32x256xbf16>
    %cst = arith.constant dense<0.000000e+00> : vector<128x256xf32>
    %6 = tpu.matmul %3, %5, %cst {dimension_numbers = #tpu.dot_dimension_numbers<[1], [0], [0], [1], [0, 0, 1, 1], [], []>} : vector<128x32xbf16>, vector<32x256xbf16>, vector<128x256xf32> -> vector<128x256xf32>
    %cst_5 = arith.constant 0.000000e+00 : f32
    %7 = vector.broadcast %cst_5 : f32 to vector<128x256xf32>
    %8 = arith.maximumf %6, %7 : vector<128x256xf32>
    %9 = vector.extract_strided_slice %8 {offsets = [0, 0], sizes = [128, 128], strides = [1, 1]} : vector<128x256xf32> to vector<128x128xf32>
    %10 = vector.extract_strided_slice %8 {offsets = [0, 128], sizes = [128, 128], strides = [1, 1]} : vector<128x256xf32> to vector<128x128xf32>
    %11 = arith.addf %9, %10 : vector<128x128xf32>
    %c0_6 = arith.constant 0 : index
    %c0_7 = arith.constant 0 : index
    %12 = vector.load %arg5[%c0_6, %c0_7] : memref<128x128xf32, #tpu.memory_space<vmem>>, vector<128x128xf32>
    %13 = arith.addf %12, %11 : vector<128x128xf32>
    %c0_8 = arith.constant 0 : index
    %c0_9 = arith.constant 0 : index
    %14 = vector.load %arg5[%c0_8, %c0_9] : memref<128x128xf32, #tpu.memory_space<vmem>>, vector<128x128xf32>
    tpu.vector_store %arg5[%c0_8, %c0_9], %13 {strides = array<i32>} : memref<128x128xf32, #tpu.memory_space<vmem>>, vector<128x128xf32>,
    %c3_i32 = arith.constant 3 : i32
    %15 = arith.cmpi eq, %arg1, %c3_i32 : i32
    %16 = arith.extui %15 : i1 to i32
    %c0_i32_10 = arith.constant 0 : i32
    %17 = arith.cmpi ne, %16, %c0_i32_10 : i32
    scf.if %17 {
      %c0_11 = arith.constant 0 : index
      %c0_12 = arith.constant 0 : index
      %18 = vector.load %arg5[%c0_11, %c0_12] : memref<128x128xf32, #tpu.memory_space<vmem>>, vector<128x128xf32>
      %c0_13 = arith.constant 0 : index
      %c0_14 = arith.constant 0 : index
      %c0_15 = arith.constant 0 : index
      %19 = vector.load %arg4[%c0_13, %c0_14, %c0_15] : memref<1x128x128xf32, #tpu.memory_space<vmem>>, vector<1x128x128xf32>
      %20 = vector.shape_cast %19 : vector<1x128x128xf32> to vector<128x128xf32>
      %21 = vector.shape_cast %18 : vector<128x128xf32> to vector<1x128x128xf32>
      tpu.vector_store %arg4[%c0_13, %c0_14, %c0_15], %21 {strides = array<i32>} : memref<1x128x128xf32, #tpu.memory_space<vmem>>, vector<1x128x128xf32>,
    } else {
    }
    return
  }
  func.func @transform_0(%arg0: i32, %arg1: i32) -> (i32, i32, i32) {
    %c0_i32 = arith.constant 0 : i32
    %c0_i32_0 = arith.constant 0 : i32
    return %arg0, %c0_i32, %arg1 : i32, i32, i32
  }
  func.func @transform_1(%arg0: i32, %arg1: i32) -> (i32, i32) {
    %c0_i32 = arith.constant 0 : i32
    %c0_i32_0 = arith.constant 0 : i32
    %c0_i32_1 = arith.constant 0 : i32
    return %c0_i32, %c0_i32_0 : i32, i32
  }
  func.func @transform_2(%arg0: i32, %arg1: i32) -> (i32, i32, i32) {
    %c0_i32 = arith.constant 0 : i32
    %c0_i32_0 = arith.constant 0 : i32
    %c0_i32_1 = arith.constant 0 : i32
    return %arg0, %c0_i32, %c0_i32_0 : i32, i32, i32
  }
}

</mosaic_0001>

<llo_original>
// kernel: encoder_cnn_forward.1
$region0: #{encoder_cnn_forward.1}
  #allocation0 [shape = 'u32[]', space=smem, size = 0x4, offset = 0x4, fixed_abs, tag = 'smem constant byte address 0x4 - core index']
  #allocation1 [shape = 'u32[144,128]{1,0:T(1,128)}', space=vmem, size = 0x12000, scoped, tag = 'internal scratch']
  #allocation2 [shape = 'f32[128,128]{1,0:T(8,128)}', space=vmem, size = 0x10000, scoped, tag = 'scratch operand']
  %s0 = inlined_call_operand.vmem [shape: bf16[2,32,1024], index: 0, kind: input, shape index: {}]
  %s1 = inlined_call_operand.vmem [shape: bf16[128,32], index: 1, kind: input, shape index: {}]
  %s2 = inlined_call_operand.vmem [shape: f32[2,128,128], index: 2, kind: output, shape index: {}]
  %s3 = sld [smem:[#allocation0]]
  $region87: #{encoder_cnn_forward.1} parent=0
    _
  %s5 = ssub.s32 1, %s3
  %s6 = scalar_select 0, %s5, %s3
  $region1: #{encoder_cnn_forward.1} parent=0
    #allocation3 [shape = 'u8[32768]{0}', space=vmem, size = 0x8000, scoped, tag = 'input window, operand 0']
    loop: start=0, step=1, limit=10
    $region2: #{encoder_cnn_forward.1} parent=1 // loop_pre_header
      _
    $region3: #{encoder_cnn_forward.1} parent=1 // loop_header
      %s8 = sphi 0, %s12
      %p9 = scmp.ge.s32.totalorder %s8, 10
      %s15 = sphi 0, %s27
      %s16 = sphi 0, %s23
      %s17 = sphi 0, %s15
      %s18 = sphi 0, %s16
      %s19 = sphi 0, %s17
      %s20 = sphi 0, %s18
      %s32 = sphi 0, %s34
      %s35 = sphi 0, %s32
      %s36 = sphi 0, %s35
      %s52 = sphi 0, %s36
      %s56 = sphi 0, %s56
      %s58 = sphi 0, %s56
      %s59 = sphi 0, %s58
      %s73 = sphi 0, %s59
      %s79 = sphi 0, %s81
      %s82 = sphi 0, %s79
      %s83 = sphi 0, %s82
      %s99 = sphi 0, %s83
    $region4: #{encoder_cnn_forward.1} parent=1 // loop_header_branch
      %11 = sbr.rel (%p9) target = $region8
    $region5: #{encoder_cnn_forward.1} parent=1 // loop_body
      %s13 = ssub.s32 %s8, 1
      %s14 = ssub.s32 %s8, 2
      %s21 = sadd.s32 1, %s16
      %p22 = scmp.ge.s32.totalorder %s21, 4
      %s23 = scalar_select %p22, 0, %s21
      %s24 = sadd.s32 1, %s15
      %s25 = scalar_select %p22, %s24, %s15
      %p26 = scmp.ge.s32.totalorder %s25, 2
      %s27 = scalar_select %p26, 0, %s25
      %s28 = ssub.s32 %s15, %s27
      %s29 = ssub.s32 %s16, %s23
      %s30 = sor.u32 %s28, %s29
      %p31 = scmp.eq.s32.totalorder %s30, 0
      %s33 = sadd.s32 %s32, 1
      %s34 = scalar_select %p31, %s32, %s33
      %p37 = pneg %p31
      %p38 = scmp.eq.s32.totalorder %s8, 7
      %p39 = por %p37, %p38
      %p40 = scmp.ne.s32.totalorder %s32, %s35
      %p41 = scmp.eq.s32.totalorder %s8, 0
      %p42 = por %p40, %p41
      %p43 = scmp.ne.s32.totalorder %s32, %s35
      %p44 = scmp.eq.s32.totalorder %s13, 7
      %p45 = por %p43, %p44
      %p46 = scmp.ne.s32.totalorder %s35, %s36
      %p47 = scmp.eq.s32.totalorder %s13, 0
      %p48 = por %p46, %p47
      %p49 = scmp.ne.s32.totalorder %s35, %s36
      %p50 = scmp.eq.s32.totalorder %s14, 7
      %p51 = por %p49, %p50
      %p53 = scmp.ne.s32.totalorder %s36, %s52
      %p54 = scmp.eq.s32.totalorder %s14, 0
      %p55 = por %p53, %p54
      %s57 = sadd.s32 %s56, 1
      %p60 = scmp.eq.s32.totalorder %s8, 7
      %p61 = scmp.ne.s32.totalorder %s56, %s58
      %p62 = scmp.eq.s32.totalorder %s8, 0
      %p63 = por %p61, %p62
      %p64 = scmp.ne.s32.totalorder %s56, %s58
      %p65 = scmp.eq.s32.totalorder %s13, 7
      %p66 = por %p64, %p65
      %p67 = scmp.ne.s32.totalorder %s58, %s59
      %p68 = scmp.eq.s32.totalorder %s13, 0
      %p69 = por %p67, %p68
      %p70 = scmp.ne.s32.totalorder %s58, %s59
      %p71 = scmp.eq.s32.totalorder %s14, 7
      %p72 = por %p70, %p71
      %p74 = scmp.ne.s32.totalorder %s59, %s73
      %p75 = scmp.eq.s32.totalorder %s14, 0
      %p76 = por %p74, %p75
      %s77 = ssub.s32 %s15, %s27
      %p78 = scmp.eq.s32.totalorder %s77, 0
      %s80 = sadd.s32 %s79, 1
      %s81 = scalar_select %p78, %s79, %s80
      %p84 = pneg %p78
      %p85 = scmp.eq.s32.totalorder %s8, 7
      %p86 = por %p84, %p85
      %p87 = scmp.ne.s32.totalorder %s79, %s82
      %p88 = scmp.eq.s32.totalorder %s8, 0
      %p89 = por %p87, %p88
      %p90 = scmp.ne.s32.totalorder %s79, %s82
      %p91 = scmp.eq.s32.totalorder %s13, 7
      %p92 = por %p90, %p91
      %p93 = scmp.ne.s32.totalorder %s82, %s83
      %p94 = scmp.eq.s32.totalorder %s13, 0
      %p95 = por %p93, %p94
      %p96 = scmp.ne.s32.totalorder %s82, %s83
      %p97 = scmp.eq.s32.totalorder %s14, 7
      %p98 = por %p96, %p97
      %p100 = scmp.ne.s32.totalorder %s83, %s99
      %p101 = scmp.eq.s32.totalorder %s14, 0
      %p102 = por %p100, %p101
      %p103 = scmp.le.s32.totalorder 1, %s8
      %p104 = scmp.lt.s32.totalorder %s8, 9
      %p105 = pnand %p103, %p104
      %p106 = pneg %p105
      // Predicated region
      $region9: #{encoder_cnn_forward.1} parent=5 // pred_check
        _
      $region10: #{encoder_cnn_forward.1} parent=5 // pred_check_branch
        %108 = sbr.rel (%p105) target = $region12
      $region11: #{encoder_cnn_forward.1} parent=5 // pred_region
        %s109 = ssub.s32 %s8, 1
        // Predicated region
        $region13: #{encoder_cnn_forward.1} parent=11 // pred_check
          %p110 = pneg %p69
        $region14: #{encoder_cnn_forward.1} parent=11 // pred_check_branch
          %112 = sbr.rel (%p110) target = $region16
        $region15: #{encoder_cnn_forward.1} parent=11 // pred_region
          _
        $region16: #{encoder_cnn_forward.1} parent=11 // pred_fallthru
          _
      $region12: #{encoder_cnn_forward.1} parent=5 // pred_fallthru
        _
      %p113 = scmp.lt.s32.totalorder %s8, 8
      // Predicated region
      $region17: #{encoder_cnn_forward.1} parent=5 // pred_check
        %p114 = pneg %p113
      $region18: #{encoder_cnn_forward.1} parent=5 // pred_check_branch
        %116 = sbr.rel (%p114) target = $region20
      $region19: #{encoder_cnn_forward.1} parent=5 // pred_region
        // Predicated region
        $region21: #{encoder_cnn_forward.1} parent=19 // pred_check
          %p117 = pneg %p42
        $region22: #{encoder_cnn_forward.1} parent=19 // pred_check_branch
          %119 = sbr.rel (%p117) target = $region24
        $region23: #{encoder_cnn_forward.1} parent=19 // pred_region
          %s120 = sand.u32 %s32, 1
          %s121 = sand.u32 %s32, 1
          %s122 = smul.addr %s121, 32
          %s123 = scalar_lea.vmem [#allocation3], %s122
          %s124 = smul.u32 2, %s16
          %s125 = smul.addr %s15, 32
          %s126 = sadd.s32 %s124, %s125
          %s127 = smul.addr %s126, 4
          %s128 = scalar_lea.vmem %s0, %s127
          // Predicated region
          $region25: #{encoder_cnn_forward.1} parent=23 // pred_check
            _
          $region26: #{encoder_cnn_forward.1} parent=23 // pred_check_branch
            %130 = sbr.rel (0) target = $region28
          $region27: #{encoder_cnn_forward.1} parent=23 // pred_region
            // Predicated region
            $region29: #{encoder_cnn_forward.1} parent=27 // pred_check
              _
            $region30: #{encoder_cnn_forward.1} parent=27 // pred_check_branch
              %132 = sbr.rel (0) target = $region32
            $region31: #{encoder_cnn_forward.1} parent=27 // pred_region
              // Predicated region
              $region44: #{encoder_cnn_forward.1} parent=31 // pred_check
                _
              $region45: #{encoder_cnn_forward.1} parent=31 // pred_check_branch
                %153 = sbr.rel (0) target = $region47
              $region46: #{encoder_cnn_forward.1} parent=31 // pred_region
                loop: start=0, step=1, limit=1
                $region48: #{encoder_cnn_forward.1} parent=46 // loop_pre_header
                  _
                $region49: #{encoder_cnn_forward.1} parent=46 // loop_header
                  %s155 = sphi 0, %s159
                  %p156 = scmp.ge.s32.totalorder %s155, 1
                  %s160 = sphi %s128, %s128
                  %s161 = sphi %s123, %s123
                $region50: #{encoder_cnn_forward.1} parent=46 // loop_header_branch
                  %158 = sbr.rel (%p156) target = $region54
                $region51: #{encoder_cnn_forward.1} parent=46 // loop_body
                  %v162 = vld [vmem:[%s160] sm:$0xff]
                  %163 = vst [vmem:[%s161] sm:$0xff] %v162
                  %v164 = vld [vmem:[%s160 + $0x20] sm:$0xff]
                  %165 = vst [vmem:[%s161 + $0x8] sm:$0xff] %v164
                  %v166 = vld [vmem:[%s160 + $0x40] sm:$0xff]
                  %167 = vst [vmem:[%s161 + $0x10] sm:$0xff] %v166
                  %v168 = vld [vmem:[%s160 + $0x60] sm:$0xff]
                  %169 = vst [vmem:[%s161 + $0x18] sm:$0xff] %v168
                $region52: #{encoder_cnn_forward.1} parent=46 // loop_footer
                  %s159 = sadd.s32 1, %s155
                $region53: #{encoder_cnn_forward.1} parent=46 // loop_footer_branch
                  %154 = sbr.rel target = $region49
                $region54: #{encoder_cnn_forward.1} parent=46 // loop_exit
                  _
              $region47: #{encoder_cnn_forward.1} parent=31 // pred_fallthru
                _
              // Predicated region
              $region55: #{encoder_cnn_forward.1} parent=31 // pred_check
                _
              $region56: #{encoder_cnn_forward.1} parent=31 // pred_check_branch
                %171 = sbr.rel target = $region58
              $region57: #{encoder_cnn_forward.1} parent=31 // pred_region
                _
              $region58: #{encoder_cnn_forward.1} parent=31 // pred_fallthru
                _
            $region32: #{encoder_cnn_forward.1} parent=27 // pred_fallthru
              _
            // Predicated region
            $region33: #{encoder_cnn_forward.1} parent=27 // pred_check
              _
            $region34: #{encoder_cnn_forward.1} parent=27 // pred_check_branch
              %134 = sbr.rel target = $region36
            $region35: #{encoder_cnn_forward.1} parent=27 // pred_region
              loop: start=0, step=1, limit=1
              $region37: #{encoder_cnn_forward.1} parent=35 // loop_pre_header
                _
              $region38: #{encoder_cnn_forward.1} parent=35 // loop_header
                %s137 = sphi 0, %s141
                %p138 = scmp.ge.s32.totalorder %s137, 1
                %s142 = sphi %s128, %s128
                %s143 = sphi %s123, %s123
              $region39: #{encoder_cnn_forward.1} parent=35 // loop_header_branch
                %140 = sbr.rel (%p138) target = $region43
              $region40: #{encoder_cnn_forward.1} parent=35 // loop_body
                %v144 = vld [vmem:[%s142] sm:$0xff]
                %145 = vst [vmem:[%s143] sm:$0xff] %v144
                %v146 = vld [vmem:[%s142 + $0x20] sm:$0xff]
                %147 = vst [vmem:[%s143 + $0x8] sm:$0xff] %v146
                %v148 = vld [vmem:[%s142 + $0x40] sm:$0xff]
                %149 = vst [vmem:[%s143 + $0x10] sm:$0xff] %v148
                %v150 = vld [vmem:[%s142 + $0x60] sm:$0xff]
                %151 = vst [vmem:[%s143 + $0x18] sm:$0xff] %v150
              $region41: #{encoder_cnn_forward.1} parent=35 // loop_footer
                %s141 = sadd.s32 1, %s137
              $region42: #{encoder_cnn_forward.1} parent=35 // loop_footer_branch
                %136 = sbr.rel target = $region38
              $region43: #{encoder_cnn_forward.1} parent=35 // loop_exit
                _
            $region36: #{encoder_cnn_forward.1} parent=27 // pred_fallthru
              _
          $region28: #{encoder_cnn_forward.1} parent=23 // pred_fallthru
            _
          %172 = vnop
        $region24: #{encoder_cnn_forward.1} parent=19 // pred_fallthru
          _
      $region20: #{encoder_cnn_forward.1} parent=5 // pred_fallthru
        _
      %p173 = scmp.le.s32.totalorder 1, %s8
      %p174 = scmp.lt.s32.totalorder %s8, 9
      %p175 = pnand %p173, %p174
      %p176 = pneg %p175
      // Predicated region
      $region59: #{encoder_cnn_forward.1} parent=5 // pred_check
        _
      $region60: #{encoder_cnn_forward.1} parent=5 // pred_check_branch
        %178 = sbr.rel (%p175) target = $region62
      $region61: #{encoder_cnn_forward.1} parent=5 // pred_region
        %s179 = ssub.s32 %s8, 1
        %s180 = sand.u32 %s35, 1
        %s181 = sand.u32 %s35, 1
        %s182 = smul.addr %s181, 32
        %s183 = scalar_lea.vmem [#allocation3], %s182
        // Predicated region
        $region63: #{encoder_cnn_forward.1} parent=61 // pred_check
          %p184 = pneg %p48
        $region64: #{encoder_cnn_forward.1} parent=61 // pred_check_branch
          %186 = sbr.rel (%p184) target = $region66
        $region65: #{encoder_cnn_forward.1} parent=61 // pred_region
          _
        $region66: #{encoder_cnn_forward.1} parent=61 // pred_fallthru
          _
        %s187 = sand.u32 %s35, 1
        %s188 = sand.u32 %s35, 1
        %s189 = smul.addr %s188, 32
        %s190 = scalar_lea.vmem [#allocation3], %s189
        %p191 = pneg %p48
        %p192 = pneg %p45
        %p193 = pneg %p69
        %p194 = pneg %p66
        %p195 = pneg %p95
        %p196 = pneg %p92
        %p197 = scmp.lt.s32.totalorder %s17, 1
        %s198 = scalar_select %p197, %s17, 1
        %s199 = smul.addr %s198, 16
        %s200 = smul.addr %s199, 8
        %s201 = scalar_lea.vmem %s2, %s200
        %s202 = smul.u32 2, %s18
        %p203 = scmp.lt.s32.totalorder %s17, 1
        %s204 = scalar_select %p203, %s17, 1
        %s205 = smul.addr %s204, 16
        %s206 = smul.addr %s205, 8
        %s207 = scalar_lea.vmem %s2, %s206
        %p209 = scmp.eq.s32.totalorder %s18, 0
        // Predicated region
        $region67: #{encoder_cnn_forward.1} parent=61 // pred_check
          %p210 = pneg %p209
        $region68: #{encoder_cnn_forward.1} parent=61 // pred_check_branch
          %212 = sbr.rel (%p210) target = $region70
        $region69: #{encoder_cnn_forward.1} parent=61 // pred_region
          %213 = vst [vmem:[#allocation2] sm:$0xff] 0.0
          %214 = vst [vmem:[#allocation2 + $0x8] sm:$0xff] 0.0
          %215 = vst [vmem:[#allocation2 + $0x10] sm:$0xff] 0.0
          %216 = vst [vmem:[#allocation2 + $0x18] sm:$0xff] 0.0
          %217 = vst [vmem:[#allocation2 + $0x20] sm:$0xff] 0.0
          %218 = vst [vmem:[#allocation2 + $0x28] sm:$0xff] 0.0
          %219 = vst [vmem:[#allocation2 + $0x30] sm:$0xff] 0.0
          %220 = vst [vmem:[#allocation2 + $0x38] sm:$0xff] 0.0
          %221 = vst [vmem:[#allocation2 + $0x40] sm:$0xff] 0.0
          %222 = vst [vmem:[#allocation2 + $0x48] sm:$0xff] 0.0
          %223 = vst [vmem:[#allocation2 + $0x50] sm:$0xff] 0.0
          %224 = vst [vmem:[#allocation2 + $0x58] sm:$0xff] 0.0
          %225 = vst [vmem:[#allocation2 + $0x60] sm:$0xff] 0.0
          %226 = vst [vmem:[#allocation2 + $0x68] sm:$0xff] 0.0
          %227 = vst [vmem:[#allocation2 + $0x70] sm:$0xff] 0.0
          %228 = vst [vmem:[#allocation2 + $0x78] sm:$0xff] 0.0
        $region70: #{encoder_cnn_forward.1} parent=61 // pred_fallthru
          _
        %v229 = vld [vmem:[%s1] sm:$0xf]
        %v230 = vld [vmem:[%s1 + $0x4] sm:$0xf]
        %v231 = vld [vmem:[%s1 + $0x8] sm:$0xf]
        %v232 = vld [vmem:[%s1 + $0xc] sm:$0xf]
        %v233 = vld [vmem:[%s1 + $0x10] sm:$0xf]
        %v234 = vld [vmem:[%s1 + $0x14] sm:$0xf]
        %v235 = vld [vmem:[%s1 + $0x18] sm:$0xf]
        %v236 = vld [vmem:[%s1 + $0x1c] sm:$0xf]
        %v237 = vld [vmem:[%s1 + $0x20] sm:$0xf]
        %v238 = vld [vmem:[%s1 + $0x24] sm:$0xf]
        %v239 = vld [vmem:[%s1 + $0x28] sm:$0xf]
        %v240 = vld [vmem:[%s1 + $0x2c] sm:$0xf]
        %v241 = vld [vmem:[%s1 + $0x30] sm:$0xf]
        %v242 = vld [vmem:[%s1 + $0x34] sm:$0xf]
        %v243 = vld [vmem:[%s1 + $0x38] sm:$0xf]
        %v244 = vld [vmem:[%s1 + $0x3c] sm:$0xf]
        %v245 = vld [vmem:[%s183] sm:$0xff]
        %v246 = vld [vmem:[%s183 + $0x8] sm:$0xff]
        %v247 = vld [vmem:[%s183 + $0x10] sm:$0xff]
        %v248 = vld [vmem:[%s183 + $0x18] sm:$0xff]
        %v265 = vunpack.c.l.b16 %v229
        %v266 = vunpack.c.l.b16 %v230
        %v267 = vunpack.c.l.b16 %v231
        %v268 = vunpack.c.l.b16 %v232
        %v269 = vunpack.c.l.b16 %v233
        %v270 = vunpack.c.l.b16 %v234
        %v271 = vunpack.c.l.b16 %v235
        %v272 = vunpack.c.l.b16 %v236
        %v273 = vunpack.c.l.b16 %v237
        %v274 = vunpack.c.l.b16 %v238
        %v275 = vunpack.c.l.b16 %v239
        %v276 = vunpack.c.l.b16 %v240
        %v277 = vunpack.c.l.b16 %v241
        %v278 = vunpack.c.l.b16 %v242
        %v279 = vunpack.c.l.b16 %v243
        %v280 = vunpack.c.l.b16 %v244
        %v281 = vpack.c.b16 %v266, %v265
        %v282 = vpack.c.b16 %v268, %v267
        %v283 = vpack.c.b16 %v270, %v269
        %v284 = vpack.c.b16 %v272, %v271
        %v285 = vpack.c.b16 %v274, %v273
        %v286 = vpack.c.b16 %v276, %v275
        %v287 = vpack.c.b16 %v278, %v277
        %v288 = vpack.c.b16 %v280, %v279
        %v293 = vunpack.c.l.b16 %v245
        %v294 = vunpack.c.h.b16 %v245
        %v295 = vunpack.c.l.b16 %v246
        %v296 = vunpack.c.h.b16 %v246
        %v297 = vunpack.c.l.b16 %v247
        %v298 = vunpack.c.h.b16 %v247
        %v299 = vunpack.c.l.b16 %v248
        %v300 = vunpack.c.h.b16 %v248
        %v301 = vpack.c.b16 %v295, %v293
        %v302 = vpack.c.b16 %v296, %v294
        %v303 = vpack.c.b16 %v299, %v297
        %v304 = vpack.c.b16 %v300, %v298
        %vm309 = vcmask 261120
        %v311 = vsel %vm309, %v281, 0
        %v314 = vsel %vm309, %v282, 0
        %v317 = vsel %vm309, %v283, 0
        %v320 = vsel %vm309, %v284, 0
        %v323 = vsel %vm309, %v285, 0
        %v326 = vsel %vm309, %v286, 0
        %v329 = vsel %vm309, %v287, 0
        %v332 = vsel %vm309, %v288, 0
        %334 = vmatprep.subr.bf16.mxu0 %v302
        %335 = vmatpush1.bf16.msra.mxu0 %v301
        %336 = vmatprep.subr.bf16.mxu0 %v304
        %337 = vmatpush1.bf16.msra.mxu0 %v303
        %338 = vmatprep.subr.bf16.mxu0 0
        %339 = vmatpush1.bf16.msra.mxu0 0
        %340 = vmatprep.subr.bf16.mxu0 0
        %341 = vmatpush1.bf16.msra.mxu0 0
        %342 = vmatprep.subr.bf16.mxu0 0
        %343 = vmatpush1.bf16.msra.mxu0 0
        %344 = vmatprep.subr.bf16.mxu0 0
        %345 = vmatpush1.bf16.msra.mxu0 0
        %346 = vmatprep.subr.bf16.mxu0 0
        %347 = vmatpush1.bf16.msra.mxu0 0
        %348 = vmatprep.subr.bf16.mxu0 0
        %349 = vmatpush1.bf16.msra.mxu0 0
        %350 = vmatprep.subr.bf16.mxu0 0
        %351 = vmatpush1.bf16.msra.mxu0 0
        %352 = vmatprep.subr.bf16.mxu0 0
        %353 = vmatpush1.bf16.msra.mxu0 0
        %354 = vmatprep.subr.bf16.mxu0 0
        %355 = vmatpush1.bf16.msra.mxu0 0
        %356 = vmatprep.subr.bf16.mxu0 0
        %357 = vmatpush1.bf16.msra.mxu0 0
        %358 = vmatprep.subr.bf16.mxu0 0
        %359 = vmatpush1.bf16.msra.mxu0 0
        %360 = vmatprep.subr.bf16.mxu0 0
        %361 = vmatpush1.bf16.msra.mxu0 0
        %362 = vmatprep.subr.bf16.mxu0 0
        %363 = vmatpush1.bf16.msra.mxu0 0
        %364 = vmatprep.subr.bf16.mxu0 0
        %365 = vmatpush1.bf16.msra.mxu0 0
        %366 = vmatprep.mubr.bf16.mxu0 0
        %367 = vmatmul.mubr.bf16.gmra.mrb[0].mxu0 %v311
        %v368 = vpop.f32.mrb[0].mxu0
        %v369 = vadd.f32 0.0, %v368
        %v370 = vpop.f32.mrb[0].mxu0
        %v371 = vadd.f32 0.0, %v370
        %v372 = vpop.f32.mrb[0].mxu0
        %v373 = vadd.f32 0.0, %v372
        %v374 = vpop.f32.mrb[0].mxu0
        %v375 = vadd.f32 0.0, %v374
        %376 = vmatprep.mubr.bf16.mxu0 0
        %377 = vmatmul.mubr.bf16.gmra.mrb[0].mxu0 %v314
        %v378 = vpop.f32.mrb[0].mxu0
        %v379 = vadd.f32 0.0, %v378
        %v380 = vpop.f32.mrb[0].mxu0
        %v381 = vadd.f32 0.0, %v380
        %v382 = vpop.f32.mrb[0].mxu0
        %v383 = vadd.f32 0.0, %v382
        %v384 = vpop.f32.mrb[0].mxu0
        %v385 = vadd.f32 0.0, %v384
        %386 = vmatprep.mubr.bf16.mxu0 0
        %387 = vmatmul.mubr.bf16.gmra.mrb[0].mxu0 %v317
        %v388 = vpop.f32.mrb[0].mxu0
        %v389 = vadd.f32 0.0, %v388
        %v390 = vpop.f32.mrb[0].mxu0
        %v391 = vadd.f32 0.0, %v390
        %v392 = vpop.f32.mrb[0].mxu0
        %v393 = vadd.f32 0.0, %v392
        %v394 = vpop.f32.mrb[0].mxu0
        %v395 = vadd.f32 0.0, %v394
        %396 = vmatprep.mubr.bf16.mxu0 0
        %397 = vmatmul.mubr.bf16.gmra.mrb[0].mxu0 %v320
        %v398 = vpop.f32.mrb[0].mxu0
        %v399 = vadd.f32 0.0, %v398
        %v400 = vpop.f32.mrb[0].mxu0
        %v401 = vadd.f32 0.0, %v400
        %v402 = vpop.f32.mrb[0].mxu0
        %v403 = vadd.f32 0.0, %v402
        %v404 = vpop.f32.mrb[0].mxu0
        %v405 = vadd.f32 0.0, %v404
        %406 = vmatprep.mubr.bf16.mxu0 0
        %407 = vmatmul.mubr.bf16.gmra.mrb[0].mxu0 %v323
        %v408 = vpop.f32.mrb[0].mxu0
        %v409 = vadd.f32 0.0, %v408
        %v410 = vpop.f32.mrb[0].mxu0
        %v411 = vadd.f32 0.0, %v410
        %v412 = vpop.f32.mrb[0].mxu0
        %v413 = vadd.f32 0.0, %v412
        %v414 = vpop.f32.mrb[0].mxu0
        %v415 = vadd.f32 0.0, %v414
        %416 = vmatprep.mubr.bf16.mxu0 0
        %417 = vmatmul.mubr.bf16.gmra.mrb[0].mxu0 %v326
        %v418 = vpop.f32.mrb[0].mxu0
        %v419 = vadd.f32 0.0, %v418
        %v420 = vpop.f32.mrb[0].mxu0
        %v421 = vadd.f32 0.0, %v420
        %v422 = vpop.f32.mrb[0].mxu0
        %v423 = vadd.f32 0.0, %v422
        %v424 = vpop.f32.mrb[0].mxu0
        %v425 = vadd.f32 0.0, %v424
        %426 = vmatprep.mubr.bf16.mxu0 0
        %427 = vmatmul.mubr.bf16.gmra.mrb[0].mxu0 %v329
        %v428 = vpop.f32.mrb[0].mxu0
        %v429 = vadd.f32 0.0, %v428
        %v430 = vpop.f32.mrb[0].mxu0
        %v431 = vadd.f32 0.0, %v430
        %v432 = vpop.f32.mrb[0].mxu0
        %v433 = vadd.f32 0.0, %v432
        %v434 = vpop.f32.mrb[0].mxu0
        %v435 = vadd.f32 0.0, %v434
        %436 = vmatprep.mubr.bf16.mxu0 0
        %437 = vmatmul.mubr.bf16.gmra.mrb[0].mxu0 %v332
        %v438 = vpop.f32.mrb[0].mxu0
        %v439 = vadd.f32 0.0, %v438
        %v440 = vpop.f32.mrb[0].mxu0
        %v441 = vadd.f32 0.0, %v440
        %v442 = vpop.f32.mrb[0].mxu0
        %v443 = vadd.f32 0.0, %v442
        %v444 = vpop.f32.mrb[0].mxu0
        %v445 = vadd.f32 0.0, %v444
        %446 = vdwg.mxu0
        %v447 = vmax.f32 %v369, 0.0
        %v448 = vmax.f32 %v371, 0.0
        %v449 = vmax.f32 %v373, 0.0
        %v450 = vmax.f32 %v375, 0.0
        %v451 = vmax.f32 %v379, 0.0
        %v452 = vmax.f32 %v381, 0.0
        %v453 = vmax.f32 %v383, 0.0
        %v454 = vmax.f32 %v385, 0.0
        %v455 = vmax.f32 %v389, 0.0
        %v456 = vmax.f32 %v391, 0.0
        %v457 = vmax.f32 %v393, 0.0
        %v458 = vmax.f32 %v395, 0.0
        %v459 = vmax.f32 %v399, 0.0
        %v460 = vmax.f32 %v401, 0.0
        %v461 = vmax.f32 %v403, 0.0
        %v462 = vmax.f32 %v405, 0.0
        %v463 = vmax.f32 %v409, 0.0
        %v464 = vmax.f32 %v411, 0.0
        %v465 = vmax.f32 %v413, 0.0
        %v466 = vmax.f32 %v415, 0.0
        %v467 = vmax.f32 %v419, 0.0
        %v468 = vmax.f32 %v421, 0.0
        %v469 = vmax.f32 %v423, 0.0
        %v470 = vmax.f32 %v425, 0.0
        %v471 = vmax.f32 %v429, 0.0
        %v472 = vmax.f32 %v431, 0.0
        %v473 = vmax.f32 %v433, 0.0
        %v474 = vmax.f32 %v435, 0.0
        %v475 = vmax.f32 %v439, 0.0
        %v476 = vmax.f32 %v441, 0.0
        %v477 = vmax.f32 %v443, 0.0
        %v478 = vmax.f32 %v445, 0.0
        %v479 = vadd.f32 %v447, %v448
        %v480 = vadd.f32 %v449, %v450
        %v481 = vadd.f32 %v451, %v452
        %v482 = vadd.f32 %v453, %v454
        %v483 = vadd.f32 %v455, %v456
        %v484 = vadd.f32 %v457, %v458
        %v485 = vadd.f32 %v459, %v460
        %v486 = vadd.f32 %v461, %v462
        %v487 = vadd.f32 %v463, %v464
        %v488 = vadd.f32 %v465, %v466
        %v489 = vadd.f32 %v467, %v468
        %v490 = vadd.f32 %v469, %v470
        %v491 = vadd.f32 %v471, %v472
        %v492 = vadd.f32 %v473, %v474
        %v493 = vadd.f32 %v475, %v476
        %v494 = vadd.f32 %v477, %v478
        %v495 = vld [vmem:[#allocation2] sm:$0xff]
        %v496 = vld [vmem:[#allocation2 + $0x8] sm:$0xff]
        %v497 = vld [vmem:[#allocation2 + $0x10] sm:$0xff]
        %v498 = vld [vmem:[#allocation2 + $0x18] sm:$0xff]
        %v499 = vld [vmem:[#allocation2 + $0x20] sm:$0xff]
        %v500 = vld [vmem:[#allocation2 + $0x28] sm:$0xff]
        %v501 = vld [vmem:[#allocation2 + $0x30] sm:$0xff]
        %v502 = vld [vmem:[#allocation2 + $0x38] sm:$0xff]
        %v503 = vld [vmem:[#allocation2 + $0x40] sm:$0xff]
        %v504 = vld [vmem:[#allocation2 + $0x48] sm:$0xff]
        %v505 = vld [vmem:[#allocation2 + $0x50] sm:$0xff]
        %v506 = vld [vmem:[#allocation2 + $0x58] sm:$0xff]
        %v507 = vld [vmem:[#allocation2 + $0x60] sm:$0xff]
        %v508 = vld [vmem:[#allocation2 + $0x68] sm:$0xff]
        %v509 = vld [vmem:[#allocation2 + $0x70] sm:$0xff]
        %v510 = vld [vmem:[#allocation2 + $0x78] sm:$0xff]
        %v511 = vadd.f32 %v495, %v479
        %v512 = vadd.f32 %v496, %v480
        %v513 = vadd.f32 %v497, %v481
        %v514 = vadd.f32 %v498, %v482
        %v515 = vadd.f32 %v499, %v483
        %v516 = vadd.f32 %v500, %v484
        %v517 = vadd.f32 %v501, %v485
        %v518 = vadd.f32 %v502, %v486
        %v519 = vadd.f32 %v503, %v487
        %v520 = vadd.f32 %v504, %v488
        %v521 = vadd.f32 %v505, %v489
        %v522 = vadd.f32 %v506, %v490
        %v523 = vadd.f32 %v507, %v491
        %v524 = vadd.f32 %v508, %v492
        %v525 = vadd.f32 %v509, %v493
        %v526 = vadd.f32 %v510, %v494
        %527 = vst [vmem:[#allocation2] sm:$0xff] %v511
        %528 = vst [vmem:[#allocation2 + $0x8] sm:$0xff] %v512
        %529 = vst [vmem:[#allocation2 + $0x10] sm:$0xff] %v513
        %530 = vst [vmem:[#allocation2 + $0x18] sm:$0xff] %v514
        %531 = vst [vmem:[#allocation2 + $0x20] sm:$0xff] %v515
        %532 = vst [vmem:[#allocation2 + $0x28] sm:$0xff] %v516
        %533 = vst [vmem:[#allocation2 + $0x30] sm:$0xff] %v517
        %534 = vst [vmem:[#allocation2 + $0x38] sm:$0xff] %v518
        %535 = vst [vmem:[#allocation2 + $0x40] sm:$0xff] %v519
        %536 = vst [vmem:[#allocation2 + $0x48] sm:$0xff] %v520
        %537 = vst [vmem:[#allocation2 + $0x50] sm:$0xff] %v521
        %538 = vst [vmem:[#allocation2 + $0x58] sm:$0xff] %v522
        %539 = vst [vmem:[#allocation2 + $0x60] sm:$0xff] %v523
        %540 = vst [vmem:[#allocation2 + $0x68] sm:$0xff] %v524
        %541 = vst [vmem:[#allocation2 + $0x70] sm:$0xff] %v525
        %542 = vst [vmem:[#allocation2 + $0x78] sm:$0xff] %v526
        %p543 = scmp.eq.s32.totalorder %s18, 3
        // Predicated region
        $region71: #{encoder_cnn_forward.1} parent=61 // pred_check
          %p544 = pneg %p543
        $region72: #{encoder_cnn_forward.1} parent=61 // pred_check_branch
          %546 = sbr.rel (%p544) target = $region74
        $region73: #{encoder_cnn_forward.1} parent=61 // pred_region
          %v547 = vld [vmem:[#allocation2] sm:$0xff]
          %v548 = vld [vmem:[#allocation2 + $0x8] sm:$0xff]
          %v549 = vld [vmem:[#allocation2 + $0x10] sm:$0xff]
          %v550 = vld [vmem:[#allocation2 + $0x18] sm:$0xff]
          %v551 = vld [vmem:[#allocation2 + $0x20] sm:$0xff]
          %v552 = vld [vmem:[#allocation2 + $0x28] sm:$0xff]
          %v553 = vld [vmem:[#allocation2 + $0x30] sm:$0xff]
          %v554 = vld [vmem:[#allocation2 + $0x38] sm:$0xff]
          %v555 = vld [vmem:[#allocation2 + $0x40] sm:$0xff]
          %v556 = vld [vmem:[#allocation2 + $0x48] sm:$0xff]
          %v557 = vld [vmem:[#allocation2 + $0x50] sm:$0xff]
          %v558 = vld [vmem:[#allocation2 + $0x58] sm:$0xff]
          %v559 = vld [vmem:[#allocation2 + $0x60] sm:$0xff]
          %v560 = vld [vmem:[#allocation2 + $0x68] sm:$0xff]
          %v561 = vld [vmem:[#allocation2 + $0x70] sm:$0xff]
          %v562 = vld [vmem:[#allocation2 + $0x78] sm:$0xff]
          %563 = vst [vmem:[%s207] sm:$0xff] %v547
          %564 = vst [vmem:[%s207 + $0x8] sm:$0xff] %v548
          %565 = vst [vmem:[%s207 + $0x10] sm:$0xff] %v549
          %566 = vst [vmem:[%s207 + $0x18] sm:$0xff] %v550
          %567 = vst [vmem:[%s207 + $0x20] sm:$0xff] %v551
          %568 = vst [vmem:[%s207 + $0x28] sm:$0xff] %v552
          %569 = vst [vmem:[%s207 + $0x30] sm:$0xff] %v553
          %570 = vst [vmem:[%s207 + $0x38] sm:$0xff] %v554
          %571 = vst [vmem:[%s207 + $0x40] sm:$0xff] %v555
          %572 = vst [vmem:[%s207 + $0x48] sm:$0xff] %v556
          %573 = vst [vmem:[%s207 + $0x50] sm:$0xff] %v557
          %574 = vst [vmem:[%s207 + $0x58] sm:$0xff] %v558
          %575 = vst [vmem:[%s207 + $0x60] sm:$0xff] %v559
          %576 = vst [vmem:[%s207 + $0x68] sm:$0xff] %v560
          %577 = vst [vmem:[%s207 + $0x70] sm:$0xff] %v561
          %578 = vst [vmem:[%s207 + $0x78] sm:$0xff] %v562
        $region74: #{encoder_cnn_forward.1} parent=61 // pred_fallthru
          _
        %p579 = scmp.lt.s32.totalorder %s17, 1
        %s580 = scalar_select %p579, %s17, 1
        %s581 = smul.addr %s580, 16
        %s582 = smul.addr %s581, 8
        %s583 = scalar_lea.vmem %s2, %s582
        // Predicated region
        $region75: #{encoder_cnn_forward.1} parent=61 // pred_check
          %p584 = pneg %p92
        $region76: #{encoder_cnn_forward.1} parent=61 // pred_check_branch
          %586 = sbr.rel (%p584) target = $region78
        $region77: #{encoder_cnn_forward.1} parent=61 // pred_region
          _
        $region78: #{encoder_cnn_forward.1} parent=61 // pred_fallthru
          _
      $region62: #{encoder_cnn_forward.1} parent=5 // pred_fallthru
        _
      %p587 = scmp.le.s32.totalorder 2, %s8
      // Predicated region
      $region79: #{encoder_cnn_forward.1} parent=5 // pred_check
        %p588 = pneg %p587
      $region80: #{encoder_cnn_forward.1} parent=5 // pred_check_branch
        %590 = sbr.rel (%p588) target = $region82
      $region81: #{encoder_cnn_forward.1} parent=5 // pred_region
        %s591 = ssub.s32 %s8, 2
        // Predicated region
        $region83: #{encoder_cnn_forward.1} parent=81 // pred_check
          %p592 = pneg %p98
        $region84: #{encoder_cnn_forward.1} parent=81 // pred_check_branch
          %594 = sbr.rel (%p592) target = $region86
        $region85: #{encoder_cnn_forward.1} parent=81 // pred_region
          %p595 = scmp.lt.s32.totalorder %s19, 1
          %s596 = scalar_select %p595, %s19, 1
          %s597 = smul.addr %s596, 16
          %s598 = smul.addr %s597, 8
          %s599 = scalar_lea.vmem %s2, %s598
        $region86: #{encoder_cnn_forward.1} parent=81 // pred_fallthru
          _
      $region82: #{encoder_cnn_forward.1} parent=5 // pred_fallthru
        _
    $region6: #{encoder_cnn_forward.1} parent=1 // loop_footer
      %s12 = sadd.s32 1, %s8
    $region7: #{encoder_cnn_forward.1} parent=1 // loop_footer_branch
      %7 = sbr.rel target = $region3
    $region8: #{encoder_cnn_forward.1} parent=1 // loop_exit
      _

</llo_original>
